<compile_context>
chip_gen: v7x
topology: tpu7x:2x2x1
jax: 0.10.0
libtpu: 0.0.40
codegen_flags: <defaults>
</compile_context>

<pallas_src>
import jax
import jax.numpy as jnp
from jax.experimental import pallas as pl
from jax.experimental.pallas import tpu as pltpu

OUT_H = 2
OUT_W = 2

# Below this per-row byte count a whole-image contiguous read beats a
# strided 2-row gather (the gather DMA is descriptor-bound, not BW-bound).
_ROW_SELECT_MIN_ROW_BYTES = 512


def _round_up(x, m):
    return ((x + m - 1) // m) * m


def _nearest_src_indices(in_size, out_size):
    # PyTorch legacy 'nearest' mode: src = floor(dst * in_size / out_size)
    return [(o * in_size) // out_size for o in range(out_size)]


def _pick_b_tile(B, in_last_dims, out_last_dims, itemsize):
    """Pick a B tile from the PADDED VMEM footprint of all blocks.

    Every block (b_tile, L) occupies round_up(b_tile, sub) x round_up(L, 128)
    elements in VMEM, and BlockSpec double-buffers each block (x2).
    """
    sub = max(8, 32 // itemsize)  # sublane packing granularity for this dtype
    per_b = sum(_round_up(d, 128)
                for d in list(in_last_dims) + list(out_last_dims)) * itemsize
    budget = 12 << 20  # fits v5e 16 MiB scoped default / v7x 64 MiB physical
    bt = budget // (2 * per_b)          # 2x double buffering of every block
    bt = max(sub, (bt // sub) * sub)    # sublane-friendly multiple
    if bt >= B:
        # Whole B fits in one tile. If B is big enough, split into two tiles
        # so both v7x TensorCores get a block (neutral on v5e/v6e).
        if B >= 4 * sub:
            return min(B, _round_up(pl.cdiv(B, 2), sub))
        return B
    return bt


def _make_flat_kernel(H, W):
    """Kernel for the small-row path: input block is (b_tile, H*W)."""
    sh = _nearest_src_indices(H, OUT_H)
    sw = _nearest_src_indices(W, OUT_W)
    flat = [h * W + w for h in sh for w in sw]  # row-major (OUT_H, OUT_W)

    def kernel(x_ref, o_ref):
        x = x_ref[...]  # (b_tile, H*W)
        for k, src in enumerate(flat):
            # static lane slices; no gather / concatenate
            o_ref[:, k:k + 1] = x[:, src:src + 1]

    return kernel


def _make_row_kernel(sw):
    """Kernel for the wide-row path: two squeezed (b_tile, W) source rows."""

    def kernel(row0_ref, row1_ref, o_ref):
        rows = (row0_ref, row1_ref)
        for oh in range(OUT_H):
            row = rows[oh][...]  # (b_tile, W)
            for ow, src in enumerate(sw):
                k = oh * OUT_W + ow
                o_ref[:, k:k + 1] = row[:, src:src + 1]

    return kernel


def upsampling_nearest2d_size2(x_nchw, *, b_tile=None):
    N, C, H, W = x_nchw.shape
    B = N * C
    itemsize = jnp.dtype(x_nchw.dtype).itemsize
    out_hw = OUT_H * OUT_W

    if W * itemsize < _ROW_SELECT_MIN_ROW_BYTES:
        # --- small-row path: one contiguous (b_tile, H*W) read per tile ---
        hw = H * W
        x = x_nchw.reshape(B, hw)  # free reshape (contiguous)
        if b_tile is None:
            b_tile = _pick_b_tile(B, [hw], [out_hw], itemsize)
        grid = (pl.cdiv(B, b_tile),)
        out = pl.pallas_call(
            _make_flat_kernel(H, W),
            out_shape=jax.ShapeDtypeStruct((B, out_hw), x.dtype),
            grid=grid,
            in_specs=[pl.BlockSpec((b_tile, hw), lambda b: (b, 0))],
            out_specs=pl.BlockSpec((b_tile, out_hw), lambda b: (b, 0)),
            compiler_params=pltpu.CompilerParams(
                dimension_semantics=("parallel",)),
        )(x)
    else:
        # --- wide-row path: fetch only the OUT_H needed source rows ---
        x = x_nchw.reshape(B, H, W)
        sh = _nearest_src_indices(H, OUT_H)
        sw = _nearest_src_indices(W, OUT_W)
        if b_tile is None:
            b_tile = _pick_b_tile(B, [W] * OUT_H, [out_hw], itemsize)
        grid = (pl.cdiv(B, b_tile),)
        in_specs = [
            pl.BlockSpec((b_tile, pl.Squeezed(), W), lambda b, r=r: (b, r, 0))
            for r in sh
        ]
        out = pl.pallas_call(
            _make_row_kernel(sw),
            out_shape=jax.ShapeDtypeStruct((B, out_hw), x.dtype),
            grid=grid,
            in_specs=in_specs,
            out_specs=pl.BlockSpec((b_tile, out_hw), lambda b: (b, 0)),
            compiler_params=pltpu.CompilerParams(
                dimension_semantics=("parallel",)),
        )(x, x)  # same array, one operand per source-row BlockSpec

    return out.reshape(N, C, OUT_H, OUT_W)


if __name__ == "__main__":
    key = jax.random.PRNGKey(0)
    # small shapes consistent with the module: NCHW = (2, 4, 16, 16)
    x = jax.random.normal(key, (2, 4, 16, 16), dtype=jnp.float32)

    y = upsampling_nearest2d_size2(x)
    jax.block_until_ready(y)

    # reference: nearest-neighbor pick of rows/cols floor(o * size_in / size_out)
    sh = jnp.array(_nearest_src_indices(16, OUT_H))
    sw = jnp.array(_nearest_src_indices(16, OUT_W))
    ref = x[:, :, sh, :][:, :, :, sw]

    assert y.shape == (2, 4, 2, 2), y.shape
    assert y.dtype == x.dtype
    assert jnp.allclose(y, ref), "mismatch vs nearest-neighbor reference"

    print("KERNEL_OK")
</pallas_src>

<mosaic_0001>
module attributes {stable_mosaic.version = 11 : i64} {
  func.func @kernel(%arg0: i32, %arg1: memref<8x256xf32, #tpu.memory_space<vmem>>, %arg2: memref<8x4xf32, #tpu.memory_space<vmem>>) attributes {dimension_semantics = [#tpu.dimension_semantics<parallel>], iteration_bounds = array<i64: 1>, scalar_prefetch = 0 : i64, scratch_operands = 0 : i64, tpu.core_type = #tpu.core_type<tc>, window_params = [{transform_indices = @transform_0, window_bounds = array<i64: 8, 256>}, {transform_indices = @transform_1, window_bounds = array<i64: 8, 4>}]} {
    %c0 = arith.constant 0 : index
    %c0_0 = arith.constant 0 : index
    %0 = vector.load %arg1[%c0, %c0_0] : memref<8x256xf32, #tpu.memory_space<vmem>>, vector<8x256xf32>
    %1 = vector.extract_strided_slice %0 {offsets = [0, 0], sizes = [8, 1], strides = [1, 1]} : vector<8x256xf32> to vector<8x1xf32>
    %c0_1 = arith.constant 0 : index
    %c0_2 = arith.constant 0 : index
    %2 = vector.load %arg2[%c0_1, %c0_2] : memref<8x4xf32, #tpu.memory_space<vmem>>, vector<8x1xf32>
    tpu.vector_store %arg2[%c0_1, %c0_2], %1 {strides = array<i32>} : memref<8x4xf32, #tpu.memory_space<vmem>>, vector<8x1xf32>,
    %3 = vector.extract_strided_slice %0 {offsets = [0, 8], sizes = [8, 1], strides = [1, 1]} : vector<8x256xf32> to vector<8x1xf32>
    %c0_3 = arith.constant 0 : index
    %c1 = arith.constant 1 : index
    %4 = vector.load %arg2[%c0_3, %c1] : memref<8x4xf32, #tpu.memory_space<vmem>>, vector<8x1xf32>
    tpu.vector_store %arg2[%c0_3, %c1], %3 {strides = array<i32>} : memref<8x4xf32, #tpu.memory_space<vmem>>, vector<8x1xf32>,
    %5 = vector.extract_strided_slice %0 {offsets = [0, 128], sizes = [8, 1], strides = [1, 1]} : vector<8x256xf32> to vector<8x1xf32>
    %c0_4 = arith.constant 0 : index
    %c2 = arith.constant 2 : index
    %6 = vector.load %arg2[%c0_4, %c2] : memref<8x4xf32, #tpu.memory_space<vmem>>, vector<8x1xf32>
    tpu.vector_store %arg2[%c0_4, %c2], %5 {strides = array<i32>} : memref<8x4xf32, #tpu.memory_space<vmem>>, vector<8x1xf32>,
    %7 = vector.extract_strided_slice %0 {offsets = [0, 136], sizes = [8, 1], strides = [1, 1]} : vector<8x256xf32> to vector<8x1xf32>
    %c0_5 = arith.constant 0 : index
    %c3 = arith.constant 3 : index
    %8 = vector.load %arg2[%c0_5, %c3] : memref<8x4xf32, #tpu.memory_space<vmem>>, vector<8x1xf32>
    tpu.vector_store %arg2[%c0_5, %c3], %7 {strides = array<i32>} : memref<8x4xf32, #tpu.memory_space<vmem>>, vector<8x1xf32>,
    return
  }
  func.func @transform_0(%arg0: i32) -> (i32, i32) {
    %c0_i32 = arith.constant 0 : i32
    %c0_i32_0 = arith.constant 0 : i32
    return %arg0, %c0_i32 : i32, i32
  }
  func.func @transform_1(%arg0: i32) -> (i32, i32) {
    %c0_i32 = arith.constant 0 : i32
    %c0_i32_0 = arith.constant 0 : i32
    return %arg0, %c0_i32 : i32, i32
  }
}

</mosaic_0001>

<llo_original>
// kernel: tpu_custom_call.1
$region0: #{tpu_custom_call.1}
  #allocation0 [shape = 'u32[]', space=smem, size = 0x4, offset = 0x4, fixed_abs, tag = 'smem constant byte address 0x4 - core index']
  #allocation1 [shape = 'u32[144,128]{1,0:T(1,128)}', space=vmem, size = 0x12000, scoped, tag = 'internal scratch']
  %s0 = inlined_call_operand.hbm [shape: f32[8,256], index: 0, kind: input, shape index: {}]
  %s1 = inlined_call_operand.vmem [shape: f32[8,4], index: 1, kind: output, shape index: {}]
  %s2 = sld [smem:[#allocation0]]
  $region18: #{tpu_custom_call.1} parent=0
    _
  %s4 = ssub.s32 1, %s2
  %s5 = scalar_select 0, %s4, %s2
  $region1: #{tpu_custom_call.1} parent=0
    #allocation2 [shape = 'u8[8192]{0}', space=vmem, size = 0x2000, scoped, tag = 'input window, operand 0, single buffered']
    #allocation3 [shape = 's32[1]{0}', space=sflag, size = 0x4, scoped, tag = 'scoped memory for tpu_custom_call.1']
    %6 = vsyncpa [#allocation3], 0
    // Predicated region
    $region2: #{tpu_custom_call.1} parent=1 // pred_check
      _
    $region3: #{tpu_custom_call.1} parent=1 // pred_check_branch
      %8 = sbr.rel (0) target = $region5
    $region4: #{tpu_custom_call.1} parent=1 // pred_region
      %s10 = ssub.s32 256, 256
      %11 = vsyncadd [#allocation3], %s10
      %s13 = sshll.u32 [#allocation2], 4
      %s14 = int_to_ptr.vmem [resolvable:$true] %s13
      %16 = dma.hbm_to_vmem [thread:$0]  %s0, 256, %s14, [#allocation3]
    $region5: #{tpu_custom_call.1} parent=1 // pred_fallthru
      _
    // Predicated region
    $region6: #{tpu_custom_call.1} parent=1 // pred_check
      _
    $region7: #{tpu_custom_call.1} parent=1 // pred_check_branch
      %18 = sbr.rel (0) target = $region9
    $region8: #{tpu_custom_call.1} parent=1 // pred_region
      %19 = dma.done [#allocation3], 256
    $region9: #{tpu_custom_call.1} parent=1 // pred_fallthru
      _
    %v20 = vld [vmem:[#allocation2] sm:$0xff]
    %v21 = vld [vmem:[#allocation2 + $0x8] sm:$0xff]
    %vm22 = vcmask 7168
    %23 = vst.msk [vmem:[%s1] sm:$0xff] %vm22, %v20
    %25 = vrot.lane.b32.xlu0 %v20, 121
    %v26 = vpop.permute.xlu0 %25
    %vm28 = vcmask 15368
    %29 = vst.msk [vmem:[%s1] sm:$0xff] %vm28, %v26
    %31 = vrot.lane.b32.xlu0 %v21, 2
    %v32 = vpop.permute.xlu0 %31
    %vm34 = vcmask 23568
    %35 = vst.msk [vmem:[%s1] sm:$0xff] %vm34, %v32
    %36 = vrot.lane.b32.xlu0 %v21, 123
    %v37 = vpop.permute.xlu0 %36
    %vm39 = vcmask 31768
    %40 = vst.msk [vmem:[%s1] sm:$0xff] %vm39, %v37
    // Predicated region
    $region10: #{tpu_custom_call.1} parent=1 // pred_check
      _
    $region11: #{tpu_custom_call.1} parent=1 // pred_check_branch
      %42 = sbr.rel (0) target = $region13
    $region12: #{tpu_custom_call.1} parent=1 // pred_region
      _
    $region13: #{tpu_custom_call.1} parent=1 // pred_fallthru
      _
    // Predicated region
    $region14: #{tpu_custom_call.1} parent=1 // pred_check
      _
    $region15: #{tpu_custom_call.1} parent=1 // pred_check_branch
      %44 = sbr.rel (0) target = $region17
    $region16: #{tpu_custom_call.1} parent=1 // pred_region
      _
    $region17: #{tpu_custom_call.1} parent=1 // pred_fallthru
      _
    %45 = vsyncpa [#allocation3], 1

</llo_original>
